<compile_context>
chip_gen: v6e
topology: v6e:2x2x1
jax: 0.10.0
libtpu: 0.0.40
codegen_flags: <defaults>
</compile_context>

<pallas_src>
import jax
import jax.numpy as jnp
from jax.experimental import pallas as pl
from jax.experimental.pallas import tpu as pltpu

IN_FEATURES = 36
OUT_FEATURES = 4


def _mydense_kernel(packed_ref, o_ref):
    # packed_ref: (1 + OUT_FEATURES, 36) = (5, 36)
    #   row 0      : x as a row vector
    #   rows 1..4  : W^T  (each row is one output feature's weights)
    # o_ref: (4, 1)
    x_row = packed_ref[0:1, :]               # (1, 36) static sublane slice
    w_t = packed_ref[1:1 + OUT_FEATURES, :]  # (4, 36) static sublane slice
    # VPU broadcast-multiply + XLU lane reduce; f32 throughout, no casts.
    o_ref[...] = jnp.sum(x_row * w_t, axis=-1, keepdims=True)


def mydense_forward(x, w):
    """x: any f32 array with 36 elements; w: (36, 4) f32. Returns (4, 1) f32."""
    x_row = jnp.reshape(x, (1, IN_FEATURES))  # row-major flatten == torch .view
    # Single packed operand -> single input DMA into the kernel.
    packed = jnp.concatenate([x_row, w.T], axis=0)  # (5, 36)

    bytes_accessed = packed.size * 4 + OUT_FEATURES * 4
    return pl.pallas_call(
        _mydense_kernel,
        out_shape=jax.ShapeDtypeStruct((OUT_FEATURES, 1), jnp.float32),
        in_specs=[pl.BlockSpec(memory_space=pltpu.MemorySpace.VMEM)],
        out_specs=pl.BlockSpec(memory_space=pltpu.MemorySpace.VMEM),
        cost_estimate=pl.CostEstimate(
            flops=2 * IN_FEATURES * OUT_FEATURES,
            transcendentals=0,
            bytes_accessed=bytes_accessed,
        ),
    )(packed)


if __name__ == "__main__":
    key = jax.random.PRNGKey(0)
    kx, kw = jax.random.split(key)

    # Input: 36 elements total (e.g. a 6x6 map), matching x.view(1, 36).
    x = jax.random.normal(kx, (6, 6), dtype=jnp.float32)
    # Parameter: torch.rand((36, 4)) -> uniform [0, 1).
    w = jax.random.uniform(kw, (IN_FEATURES, OUT_FEATURES), dtype=jnp.float32)

    out = mydense_forward(x, w)
    out = jax.block_until_ready(out)

    # Sanity check against plain JAX reference.
    ref = (jnp.reshape(x, (1, IN_FEATURES)) @ w).T
    assert out.shape == (OUT_FEATURES, 1), out.shape
    assert jnp.allclose(out, ref, atol=1e-5, rtol=1e-5), (out, ref)

    print("KERNEL_OK")
</pallas_src>

<mosaic_0001>
module attributes {stable_mosaic.version = 11 : i64} {
  func.func @_mydense_kernel(%arg0: memref<5x36xf32, #tpu.memory_space<vmem>>, %arg1: memref<4x1xf32, #tpu.memory_space<vmem>>) attributes {dimension_semantics = [], scalar_prefetch = 0 : i64, scratch_operands = 0 : i64, tpu.core_type = #tpu.core_type<tc>} {
    %c0 = arith.constant 0 : index
    %c0_0 = arith.constant 0 : index
    %0 = vector.load %arg0[%c0, %c0_0] : memref<5x36xf32, #tpu.memory_space<vmem>>, vector<1x36xf32>
    %c1 = arith.constant 1 : index
    %c0_1 = arith.constant 0 : index
    %1 = vector.load %arg0[%c1, %c0_1] : memref<5x36xf32, #tpu.memory_space<vmem>>, vector<4x36xf32>
    %2 = vector.broadcast %0 : vector<1x36xf32> to vector<4x36xf32>
    %3 = arith.mulf %2, %1 : vector<4x36xf32>
    %cst = arith.constant dense<0.000000e+00> : vector<4xf32>
    %4 = vector.multi_reduction <add>, %3, %cst [1] : vector<4x36xf32> to vector<4xf32>
    %5 = vector.shape_cast %4 : vector<4xf32> to vector<4x1xf32>
    %c0_2 = arith.constant 0 : index
    %c0_3 = arith.constant 0 : index
    %6 = vector.load %arg1[%c0_2, %c0_3] : memref<4x1xf32, #tpu.memory_space<vmem>>, vector<4x1xf32>
    tpu.vector_store %arg1[%c0_2, %c0_3], %5 {strides = array<i32>} : memref<4x1xf32, #tpu.memory_space<vmem>>, vector<4x1xf32>,
    return
  }
}

</mosaic_0001>

<llo_original>
// kernel: tpu_custom_call.1
$region0: #{tpu_custom_call.1}
  #allocation0 [shape = 'u32[]', space=smem, size = 0x4, offset = 0x4, fixed_abs, tag = 'smem constant byte address 0x4 - core index']
  #allocation1 [shape = 'u32[144,128]{1,0:T(1,128)}', space=vmem, size = 0x12000, scoped, tag = 'internal scratch']
  %s0 = inlined_call_operand.hbm [shape: f32[5,36], index: 0, kind: input, shape index: {}]
  %s1 = inlined_call_operand.vmem [shape: f32[4,1], index: 1, kind: output, shape index: {}]
  %s2 = sld [smem:[#allocation0]]
  $region18: #{tpu_custom_call.1} parent=0
    _
  %s4 = ssub.s32 1, %s2
  %s5 = scalar_select 0, %s4, %s2
  $region1: #{tpu_custom_call.1} parent=0
    #allocation2 [shape = 'u8[4096]{0}', space=vmem, size = 0x1000, scoped, tag = 'input window, operand 0, single buffered']
    #allocation3 [shape = 's32[1]{0}', space=sflag, size = 0x4, scoped, tag = 'scoped memory for tpu_custom_call.1']
    %6 = vsyncpa [#allocation3], 0
    // Predicated region
    $region2: #{tpu_custom_call.1} parent=1 // pred_check
      _
    $region3: #{tpu_custom_call.1} parent=1 // pred_check_branch
      %8 = sbr.rel (0) target = $region5
    $region4: #{tpu_custom_call.1} parent=1 // pred_region
      %s10 = ssub.s32 128, 128
      %11 = vsyncadd [#allocation3], %s10
      %s13 = sshll.u32 [#allocation2], 4
      %s14 = int_to_ptr.vmem [resolvable:$true] %s13
      %16 = dma.hbm_to_vmem [thread:$0]  %s0, 128, %s14, [#allocation3]
    $region5: #{tpu_custom_call.1} parent=1 // pred_fallthru
      _
    // Predicated region
    $region6: #{tpu_custom_call.1} parent=1 // pred_check
      _
    $region7: #{tpu_custom_call.1} parent=1 // pred_check_branch
      %18 = sbr.rel (0) target = $region9
    $region8: #{tpu_custom_call.1} parent=1 // pred_region
      %19 = dma.done [#allocation3], 128
    $region9: #{tpu_custom_call.1} parent=1 // pred_fallthru
      _
    %v20 = vld [vmem:[#allocation2] sm:$0x1]
    %v21 = vld [vmem:[#allocation2 + $0x1] sm:$0xf]
    %v22 = vlaneseq
    %v23 = vshrl.u32 %v22, 7
    %v24 = vsub.s32 0, %v23
    %v25 = vrot.slane %v20, %v24
    %v26 = vmul.f32 %v25, %v21
    %vm27 = vcmask 289792
    %v28 = vsel %vm27, %v26, 0.0
    %29 = vadd.xlane.f32.xlu0 %v28
    %v30 = vpop.xlane.xlu0 %29
    %vm31 = vcmask 3072
    %32 = vst.msk [vmem:[%s1] sm:$0xf] %vm31, %v30
    // Predicated region
    $region10: #{tpu_custom_call.1} parent=1 // pred_check
      _
    $region11: #{tpu_custom_call.1} parent=1 // pred_check_branch
      %34 = sbr.rel (0) target = $region13
    $region12: #{tpu_custom_call.1} parent=1 // pred_region
      _
    $region13: #{tpu_custom_call.1} parent=1 // pred_fallthru
      _
    // Predicated region
    $region14: #{tpu_custom_call.1} parent=1 // pred_check
      _
    $region15: #{tpu_custom_call.1} parent=1 // pred_check_branch
      %36 = sbr.rel (0) target = $region17
    $region16: #{tpu_custom_call.1} parent=1 // pred_region
      _
    $region17: #{tpu_custom_call.1} parent=1 // pred_fallthru
      _
    %37 = vsyncpa [#allocation3], 1

</llo_original>
